<compile_context>
chip_gen: v7x
topology: tpu7x:2x2x1
jax: 0.10.0
libtpu: 0.0.40
codegen_flags: <defaults>
</compile_context>

<pallas_src>
import functools

import jax
import jax.numpy as jnp
from jax.experimental import pallas as pl
from jax.experimental.pallas import tpu as pltpu


def _round_up(v, m):
    return (v + m - 1) // m * m


def _sublane_pack(dtype):
    # Sublane packing of the (8,128) vreg tile: 8 for f32, 16 for bf16, 32 for i8.
    return max(8, 32 // jnp.dtype(dtype).itemsize)


def _attention_kernel(*refs, epsilon, use_context, use_bias, has_mask,
                      seq_len, seq_tile, mxu_score):
    """One (batch tile, sequence chunk) grid step.

    Ref order (statically determined by the flags):
      x, vec(W or u), (bias), (mask), out, wsum_acc, ssum_acc
    """
    it = iter(refs)
    x_ref = next(it)
    vec_ref = next(it)
    b_ref = next(it) if (use_bias and not use_context) else None
    mask_ref = next(it) if has_mask else None
    o_ref = next(it)
    wsum_acc = next(it)      # (TB, F) f32: running unnormalized weighted sum
    ssum_acc = next(it)      # (TB, 1) f32: running sum of exp scores

    j = pl.program_id(1)

    @pl.when(j == 0)
    def _init():
        wsum_acc[...] = jnp.zeros_like(wsum_acc)
        ssum_acc[...] = jnp.zeros_like(ssum_acc)

    x = x_ref[...]                                    # (TB, TS, F), native dtype
    TB, TS, F = x.shape

    partial_chunk = (seq_len % seq_tile) != 0
    valid = None
    if partial_chunk:
        # Zero the padded rows of x (and later their scores) so NaN/Inf garbage
        # in the out-of-range tail cannot reach the accumulators.
        pos = j * seq_tile + jax.lax.broadcasted_iota(jnp.int32, (TB, TS, 1), 1)
        valid = pos < seq_len
        x = jnp.where(valid, x, jnp.zeros_like(x))

    # ---- attention score: one MXU matvec against the resident vector --------
    if mxu_score:
        # (TB*TS, F) @ (F, 1) -> (TB*TS, 1); leading-dim reshapes are
        # layout-free because TS is sublane-aligned on this path.
        score = jax.lax.dot_general(
            x.reshape(TB * TS, F), vec_ref[...],
            dimension_numbers=(((1,), (0,)), ((), ())),
            preferred_element_type=jnp.float32).reshape(TB, TS, 1)
    else:
        # Tiny / unaligned tiles only: VPU multiply + lane reduce (f32 vector).
        vec = vec_ref[...].reshape(1, 1, F)
        score = jnp.sum(x * vec, axis=-1, keepdims=True)       # (TB, TS, 1) f32

    if not use_context:
        if use_bias:
            score = score + b_ref[...]                          # (1, TS, 1) f32
        score = jnp.tanh(score)

    # Matches PyTorch: plain exp, no max-subtraction.
    a = jnp.exp(score)                                          # (TB, TS, 1) f32
    if has_mask:
        a = a * mask_ref[...].astype(jnp.float32)[:, :, None]
    if partial_chunk:
        a = jnp.where(valid, a, 0.0)

    # Sequence reduction along the sublane axis (cheap): weights stay in f32.
    ssum_acc[...] += jnp.sum(a, axis=1)                         # (TB, 1)
    wsum_acc[...] += jnp.sum(a * x, axis=1)                     # (TB, F) f32

    @pl.when(j == pl.num_programs(1) - 1)
    def _finalize():
        inv = 1.0 / (ssum_acc[...] + epsilon)                   # (TB, 1), exact
        o_ref[...] = (wsum_acc[...] * inv).astype(o_ref.dtype)


def _vmem_limit_bytes():
    """Per-generation VMEM ceiling (v5e/v6e: ~70 MiB of 128; v7x: ~35 of 64)."""
    cap = None
    try:
        info = pltpu.get_tpu_info()
        cap = int(getattr(info, "vmem_capacity_bytes", 0)) or None
    except Exception:
        cap = None
    if cap is None:
        cap = 64 * 1024 * 1024          # conservative: v7x per-TC VMEM
    return min(int(cap * 0.55), 100 * 1024 * 1024)


def _pick_tiles(B, S, F, x_dtype, has_mask, has_bias, mask_itemsize, budget):
    """Pick (batch tile, seq tile) so all double-buffered blocks + scratch fit.

    Accounts for physical VMEM layout: lane dims pad to 128, sublane dims pad
    to the dtype packing (8 f32 / 16 bf16 / 32 int8).
    """
    isz = jnp.dtype(x_dtype).itemsize
    spack = _sublane_pack(x_dtype)
    align = 8 if isz >= 4 else 16        # keep bf16 batch tiles sublane-packed
    f_lane = _round_up(F, 128)

    def footprint(tb, ts):
        tot = 2 * tb * _round_up(ts, spack) * f_lane * isz             # x
        if has_mask:
            tot += 2 * _round_up(tb, 16) * _round_up(ts, 128) * mask_itemsize
        if has_bias:
            tot += 2 * _round_up(ts, 8) * 128 * 4                      # (1,TS,1)
        tot += 2 * _round_up(F, spack) * 128 * 4                       # vector
        tot += 2 * _round_up(tb, 8) * f_lane * isz                     # out
        tot += _round_up(tb, 8) * (f_lane + 128) * 4                   # scratch
        return tot

    # Batch tile: aim for >=2 (>=4 for large B) steps on the "parallel" axis so
    # v7x's two TensorCores both get work; no effect on v5e/v6e.
    if B <= align:
        tb = B
    else:
        pieces = 4 if B >= 4 * align else 2
        tb = min(B, _round_up(-(-B // pieces), align))

    ts = S
    # Shrink the sequence chunk first (keeps batch parallelism); 128-aligned so
    # mask / x / bias blocks stay (8,128)-legal.  Partial chunks are masked.
    while footprint(tb, ts) > budget and ts > 128:
        ts = max(128, (ts // 2) // 128 * 128)
    while footprint(tb, ts) > budget and tb > align:
        nt = max(align, (tb // 2) // align * align)
        if nt == tb:
            break
        tb = nt
    return tb, ts


def attention_layer_forward(x, W, b=None, u=None, mask=None, *, epsilon=1e-8,
                            use_bias=True, use_context=False):
    """Pallas-backed forward matching AttentionLayer.forward.

    x    : (B, S, F)            W : (F,)
    b    : (S,)  (if use_bias)  u : (F,)  (if use_context)
    mask : (B, S) or None (any 0/1 dtype; pass narrow dtypes to save HBM)
    returns (B, F)
    """
    B, S, F = x.shape
    has_mask = mask is not None
    has_bias = bool(use_bias) and not use_context
    isz = jnp.dtype(x.dtype).itemsize

    if has_mask and mask.dtype == jnp.bool_:
        mask = mask.astype(jnp.bfloat16)      # keep it narrow, but DMA-friendly
    mask_isz = jnp.dtype(mask.dtype).itemsize if has_mask else 0

    vmem_limit = _vmem_limit_bytes()
    budget = int(vmem_limit * 0.8)
    TB, TS = _pick_tiles(B, S, F, x.dtype, has_mask, has_bias, mask_isz, budget)

    spack = _sublane_pack(x.dtype)
    # MXU score path needs layout-free (TB,TS,F)->(TB*TS,F) reshapes.
    mxu_score = (TS % spack == 0)

    grid = (pl.cdiv(B, TB), pl.cdiv(S, TS))

    kernel = functools.partial(
        _attention_kernel, epsilon=float(epsilon), use_context=use_context,
        use_bias=use_bias, has_mask=has_mask, seq_len=S, seq_tile=TS,
        mxu_score=mxu_score)

    # Build input specs/args based on static flags (skip dead inputs entirely).
    in_specs = [pl.BlockSpec((TB, TS, F), lambda i, j: (i, j, 0))]       # x tiles
    args = [x]

    vec = u if use_context else W            # context=True: tanh/W/b are dead
    if mxu_score:
        vec_arr = vec.reshape(F, 1).astype(x.dtype)       # MXU rhs, native dtype
    else:
        vec_arr = vec.reshape(1, F).astype(jnp.float32)   # VPU fallback, f32
    in_specs.append(pl.BlockSpec(vec_arr.shape, lambda i, j: (0, 0)))    # resident
    args.append(vec_arr)

    if has_bias:
        in_specs.append(pl.BlockSpec((1, TS, 1), lambda i, j: (0, j, 0)))
        args.append(b.reshape(1, S, 1).astype(jnp.float32))

    if has_mask:
        in_specs.append(pl.BlockSpec((TB, TS), lambda i, j: (i, j)))
        args.append(mask)

    flops = 4 * B * S * F                    # score matvec + weighted-sum
    transcendentals = B * S + (0 if use_context else B * S)
    bytes_accessed = (x.size * isz + B * F * isz
                      + (B * S * mask_isz if has_mask else 0)
                      + (S * 4 if has_bias else 0) + F * isz)

    return pl.pallas_call(
        kernel,
        out_shape=jax.ShapeDtypeStruct((B, F), x.dtype),
        grid=grid,
        in_specs=in_specs,
        out_specs=pl.BlockSpec((TB, F), lambda i, j: (i, 0)),
        scratch_shapes=[pltpu.VMEM((TB, F), jnp.float32),
                        pltpu.VMEM((TB, 1), jnp.float32)],
        compiler_params=pltpu.CompilerParams(
            dimension_semantics=("parallel", "arbitrary"),
            vmem_limit_bytes=int(vmem_limit)),
        cost_estimate=pl.CostEstimate(flops=flops,
                                      transcendentals=transcendentals,
                                      bytes_accessed=int(bytes_accessed)),
    )(*args)


def _reference_forward(x, W, b, u, mask, *, epsilon=1e-8,
                       use_bias=True, use_context=False):
    """Pure-JAX reference mirroring the PyTorch forward (for verification)."""
    a = jnp.einsum("bsf,f->bs", x, W)
    if use_bias:
        a = a + b[None, :]
    a = jnp.tanh(a)
    if use_context:
        a = jnp.einsum("bsf,f->bs", x, u)
    a = jnp.exp(a)
    if mask is not None:
        a = a * mask.astype(x.dtype)
    a_sum = jnp.sum(a, axis=1, keepdims=True) + epsilon
    a = a / a_sum
    return jnp.sum(x * a[:, :, None], axis=1)


if __name__ == "__main__":
    # Small shapes consistent with the module: (batch, seq_len, feature_dim)
    B, S, F = 2, 8, 32
    key = jax.random.PRNGKey(0)
    kx, kw, ku, km = jax.random.split(key, 4)

    x = jax.random.normal(kx, (B, S, F), dtype=jnp.float32)

    # Parameter init mimicking reset_parameters():
    #   W, u: xavier_uniform on shape (1, F)  -> bound = sqrt(6 / (F + 1))
    #   b   : zeros(S)
    bound = (6.0 / (F + 1)) ** 0.5
    W = jax.random.uniform(kw, (F,), minval=-bound, maxval=bound,
                           dtype=jnp.float32)
    b = jnp.zeros((S,), dtype=jnp.float32)
    u = jax.random.uniform(ku, (F,), minval=-bound, maxval=bound,
                           dtype=jnp.float32)
    # Narrow-dtype mask (values 0/1 are exact in bf16).
    mask = (jax.random.uniform(km, (B, S)) > 0.2).astype(jnp.bfloat16)

    # Case 1: bias=True, context=False, with mask.
    out = attention_layer_forward(x, W, b=b, mask=mask,
                                  epsilon=1e-8, use_bias=True,
                                  use_context=False)
    out = jax.block_until_ready(out)
    ref = _reference_forward(x, W, b, u, mask,
                             epsilon=1e-8, use_bias=True, use_context=False)
    assert out.shape == (B, F)
    assert jnp.allclose(out, ref, atol=2e-5, rtol=2e-5)

    # Case 2: context=True (u-path only), no mask.
    out_c = attention_layer_forward(x, W, b=b, u=u, mask=None,
                                    epsilon=1e-8, use_bias=True,
                                    use_context=True)
    out_c = jax.block_until_ready(out_c)
    ref_c = _reference_forward(x, W, b, u, None,
                               epsilon=1e-8, use_bias=True, use_context=True)
    assert jnp.allclose(out_c, ref_c, atol=2e-5, rtol=2e-5)

    print("KERNEL_OK")
</pallas_src>

<mosaic_0001>
module attributes {stable_mosaic.version = 11 : i64} {
  func.func @_attention_kernel(%arg0: i32, %arg1: i32, %arg2: memref<2x8x32xf32, #tpu.memory_space<vmem>>, %arg3: memref<32x1xf32, #tpu.memory_space<vmem>>, %arg4: memref<1x8x1xf32, #tpu.memory_space<vmem>>, %arg5: memref<2x8xbf16, #tpu.memory_space<vmem>>, %arg6: memref<2x32xf32, #tpu.memory_space<vmem>>, %arg7: memref<2x32xf32, #tpu.memory_space<vmem>>, %arg8: memref<2x1xf32, #tpu.memory_space<vmem>>) attributes {dimension_semantics = [#tpu.dimension_semantics<parallel>, #tpu.dimension_semantics<arbitrary>], iteration_bounds = array<i64: 1, 1>, scalar_prefetch = 0 : i64, scratch_operands = 2 : i64, tpu.core_type = #tpu.core_type<tc>, window_params = [{transform_indices = @transform_0, window_bounds = array<i64: 2, 8, 32>}, {pipeline_mode = #tpu.pipeline_mode<synchronous>, transform_indices = @transform_1, window_bounds = array<i64: 32, 1>}, {transform_indices = @transform_2, window_bounds = array<i64: 1, 8, 1>}, {transform_indices = @transform_3, window_bounds = array<i64: 2, 8>}, {transform_indices = @transform_4, window_bounds = array<i64: 2, 32>}]} {
    %c0_i32 = arith.constant 0 : i32
    %0 = arith.cmpi eq, %arg1, %c0_i32 : i32
    %1 = arith.extui %0 : i1 to i32
    %c0_i32_0 = arith.constant 0 : i32
    %2 = arith.cmpi ne, %1, %c0_i32_0 : i32
    scf.if %2 {
      %cst_22 = arith.constant 0.000000e+00 : f32
      %30 = vector.broadcast %cst_22 : f32 to vector<2x32xf32>
      %c0_23 = arith.constant 0 : index
      %c0_24 = arith.constant 0 : index
      %31 = vector.load %arg7[%c0_23, %c0_24] : memref<2x32xf32, #tpu.memory_space<vmem>>, vector<2x32xf32>
      tpu.vector_store %arg7[%c0_23, %c0_24], %30 {strides = array<i32>} : memref<2x32xf32, #tpu.memory_space<vmem>>, vector<2x32xf32>,
      %cst_25 = arith.constant 0.000000e+00 : f32
      %32 = vector.broadcast %cst_25 : f32 to vector<2x1xf32>
      %c0_26 = arith.constant 0 : index
      %c0_27 = arith.constant 0 : index
      %33 = vector.load %arg8[%c0_26, %c0_27] : memref<2x1xf32, #tpu.memory_space<vmem>>, vector<2x1xf32>
      tpu.vector_store %arg8[%c0_26, %c0_27], %32 {strides = array<i32>} : memref<2x1xf32, #tpu.memory_space<vmem>>, vector<2x1xf32>,
    } else {
    }
    %c0 = arith.constant 0 : index
    %c0_1 = arith.constant 0 : index
    %c0_2 = arith.constant 0 : index
    %3 = vector.load %arg2[%c0, %c0_1, %c0_2] : memref<2x8x32xf32, #tpu.memory_space<vmem>>, vector<2x8x32xf32>
    %4 = vector.shape_cast %3 : vector<2x8x32xf32> to vector<16x32xf32>
    %c0_3 = arith.constant 0 : index
    %c0_4 = arith.constant 0 : index
    %5 = vector.load %arg3[%c0_3, %c0_4] : memref<32x1xf32, #tpu.memory_space<vmem>>, vector<32x1xf32>
    %cst = arith.constant dense<0.000000e+00> : vector<16x1xf32>
    %6 = tpu.matmul %4, %5, %cst {dimension_numbers = #tpu.dot_dimension_numbers<[1], [0], [0], [1], [0, 0, 1, 1], [], []>} : vector<16x32xf32>, vector<32x1xf32>, vector<16x1xf32> -> vector<16x1xf32>
    %7 = vector.shape_cast %6 : vector<16x1xf32> to vector<2x8x1xf32>
    %c0_5 = arith.constant 0 : index
    %c0_6 = arith.constant 0 : index
    %c0_7 = arith.constant 0 : index
    %8 = vector.load %arg4[%c0_5, %c0_6, %c0_7] : memref<1x8x1xf32, #tpu.memory_space<vmem>>, vector<1x8x1xf32>
    %9 = vector.broadcast %8 : vector<1x8x1xf32> to vector<2x8x1xf32>
    %10 = arith.addf %7, %9 : vector<2x8x1xf32>
    %11 = math.tanh %10 : vector<2x8x1xf32>
    %12 = math.exp %11 : vector<2x8x1xf32>
    %c0_8 = arith.constant 0 : index
    %c0_9 = arith.constant 0 : index
    %13 = vector.load %arg5[%c0_8, %c0_9] : memref<2x8xbf16, #tpu.memory_space<vmem>>, vector<2x8xbf16>
    %14 = arith.extf %13 : vector<2x8xbf16> to vector<2x8xf32>
    %15 = vector.shape_cast %14 : vector<2x8xf32> to vector<2x8x1xf32>
    %16 = arith.mulf %12, %15 : vector<2x8x1xf32>
    %c0_10 = arith.constant 0 : index
    %c0_11 = arith.constant 0 : index
    %17 = vector.load %arg8[%c0_10, %c0_11] : memref<2x1xf32, #tpu.memory_space<vmem>>, vector<2x1xf32>
    %cst_12 = arith.constant dense<0.000000e+00> : vector<2x1xf32>
    %18 = vector.multi_reduction <add>, %16, %cst_12 [1] : vector<2x8x1xf32> to vector<2x1xf32>
    %19 = arith.addf %17, %18 : vector<2x1xf32>
    %c0_13 = arith.constant 0 : index
    %c0_14 = arith.constant 0 : index
    %20 = vector.load %arg8[%c0_13, %c0_14] : memref<2x1xf32, #tpu.memory_space<vmem>>, vector<2x1xf32>
    tpu.vector_store %arg8[%c0_13, %c0_14], %19 {strides = array<i32>} : memref<2x1xf32, #tpu.memory_space<vmem>>, vector<2x1xf32>,
    %c0_15 = arith.constant 0 : index
    %c0_16 = arith.constant 0 : index
    %21 = vector.load %arg7[%c0_15, %c0_16] : memref<2x32xf32, #tpu.memory_space<vmem>>, vector<2x32xf32>
    %22 = vector.broadcast %16 : vector<2x8x1xf32> to vector<2x8x32xf32>
    %23 = arith.mulf %22, %3 : vector<2x8x32xf32>
    %cst_17 = arith.constant dense<0.000000e+00> : vector<2x32xf32>
    %24 = vector.multi_reduction <add>, %23, %cst_17 [1] : vector<2x8x32xf32> to vector<2x32xf32>
    %25 = arith.addf %21, %24 : vector<2x32xf32>
    %c0_18 = arith.constant 0 : index
    %c0_19 = arith.constant 0 : index
    %26 = vector.load %arg7[%c0_18, %c0_19] : memref<2x32xf32, #tpu.memory_space<vmem>>, vector<2x32xf32>
    tpu.vector_store %arg7[%c0_18, %c0_19], %25 {strides = array<i32>} : memref<2x32xf32, #tpu.memory_space<vmem>>, vector<2x32xf32>,
    %c0_i32_20 = arith.constant 0 : i32
    %27 = arith.cmpi eq, %arg1, %c0_i32_20 : i32
    %28 = arith.extui %27 : i1 to i32
    %c0_i32_21 = arith.constant 0 : i32
    %29 = arith.cmpi ne, %28, %c0_i32_21 : i32
    scf.if %29 {
      %c0_22 = arith.constant 0 : index
      %c0_23 = arith.constant 0 : index
      %30 = vector.load %arg8[%c0_22, %c0_23] : memref<2x1xf32, #tpu.memory_space<vmem>>, vector<2x1xf32>
      %cst_24 = arith.constant 9.99999993E-9 : f32
      %31 = vector.broadcast %cst_24 : f32 to vector<2x1xf32>
      %32 = arith.addf %30, %31 : vector<2x1xf32>
      %cst_25 = arith.constant 1.000000e+00 : f32
      %33 = vector.broadcast %cst_25 : f32 to vector<2x1xf32>
      %34 = arith.divf %33, %32 : vector<2x1xf32>
      %c0_26 = arith.constant 0 : index
      %c0_27 = arith.constant 0 : index
      %35 = vector.load %arg7[%c0_26, %c0_27] : memref<2x32xf32, #tpu.memory_space<vmem>>, vector<2x32xf32>
      %36 = vector.broadcast %34 : vector<2x1xf32> to vector<2x32xf32>
      %37 = arith.mulf %35, %36 : vector<2x32xf32>
      %c0_28 = arith.constant 0 : index
      %c0_29 = arith.constant 0 : index
      %38 = vector.load %arg6[%c0_28, %c0_29] : memref<2x32xf32, #tpu.memory_space<vmem>>, vector<2x32xf32>
      tpu.vector_store %arg6[%c0_28, %c0_29], %37 {strides = array<i32>} : memref<2x32xf32, #tpu.memory_space<vmem>>, vector<2x32xf32>,
    } else {
    }
    return
  }
  func.func @transform_0(%arg0: i32, %arg1: i32) -> (i32, i32, i32) {
    %c0_i32 = arith.constant 0 : i32
    %c0_i32_0 = arith.constant 0 : i32
    return %arg0, %arg1, %c0_i32 : i32, i32, i32
  }
  func.func @transform_1(%arg0: i32, %arg1: i32) -> (i32, i32) {
    %c0_i32 = arith.constant 0 : i32
    %c0_i32_0 = arith.constant 0 : i32
    %c0_i32_1 = arith.constant 0 : i32
    return %c0_i32, %c0_i32_0 : i32, i32
  }
  func.func @transform_2(%arg0: i32, %arg1: i32) -> (i32, i32, i32) {
    %c0_i32 = arith.constant 0 : i32
    %c0_i32_0 = arith.constant 0 : i32
    %c0_i32_1 = arith.constant 0 : i32
    return %c0_i32, %arg1, %c0_i32_0 : i32, i32, i32
  }
  func.func @transform_3(%arg0: i32, %arg1: i32) -> (i32, i32) {
    %c0_i32 = arith.constant 0 : i32
    return %arg0, %arg1 : i32, i32
  }
  func.func @transform_4(%arg0: i32, %arg1: i32) -> (i32, i32) {
    %c0_i32 = arith.constant 0 : i32
    %c0_i32_0 = arith.constant 0 : i32
    return %arg0, %c0_i32 : i32, i32
  }
}

</mosaic_0001>

<llo_original>
// kernel: tpu_custom_call.1
$region0: #{tpu_custom_call.1}
  #allocation0 [shape = 'u32[]', space=smem, size = 0x4, offset = 0x4, fixed_abs, tag = 'smem constant byte address 0x4 - core index']
  #allocation1 [shape = 'u32[144,128]{1,0:T(1,128)}', space=vmem, size = 0x12000, scoped, tag = 'internal scratch']
  #allocation2 [shape = 'f32[2,32]{1,0:T(2,128)}', space=vmem, size = 0x400, scoped, tag = 'scratch operand']
  #allocation3 [shape = 'f32[2,1]{1,0:T(2,128)}', space=vmem, size = 0x400, scoped, tag = 'scratch operand']
  %s0 = inlined_call_operand.vmem [shape: f32[2,8,32], index: 0, kind: input, shape index: {}]
  %s1 = inlined_call_operand.vmem [shape: f32[32,1], index: 1, kind: input, shape index: {}]
  %s2 = inlined_call_operand.vmem [shape: f32[1,8,1], index: 2, kind: input, shape index: {}]
  %s3 = inlined_call_operand.vmem [shape: bf16[2,8], index: 3, kind: input, shape index: {}]
  %s4 = inlined_call_operand.hbm [shape: f32[2,32], index: 4, kind: output, shape index: {}]
  %s5 = sld [smem:[#allocation0]]
  $region34: #{tpu_custom_call.1} parent=0
    _
  %s7 = ssub.s32 1, %s5
  %s8 = scalar_select 0, %s7, %s5
  $region1: #{tpu_custom_call.1} parent=0
    #allocation4 [shape = 'u8[1024]{0}', space=vmem, size = 0x400, scoped, tag = 'output window, operand 0, single buffered']
    #allocation5 [shape = 's32[1]{0}', space=sflag, size = 0x4, scoped, tag = 'scoped memory for tpu_custom_call.1']
    %9 = vsyncpa [#allocation5], 0
    // Predicated region
    $region2: #{tpu_custom_call.1} parent=1 // pred_check
      _
    $region3: #{tpu_custom_call.1} parent=1 // pred_check_branch
      %11 = sbr.rel (0) target = $region5
    $region4: #{tpu_custom_call.1} parent=1 // pred_region
      _
    $region5: #{tpu_custom_call.1} parent=1 // pred_fallthru
      _
    // Predicated region
    $region6: #{tpu_custom_call.1} parent=1 // pred_check
      _
    $region7: #{tpu_custom_call.1} parent=1 // pred_check_branch
      %13 = sbr.rel (0) target = $region9
    $region8: #{tpu_custom_call.1} parent=1 // pred_region
      _
    $region9: #{tpu_custom_call.1} parent=1 // pred_fallthru
      _
    // Predicated region
    $region10: #{tpu_custom_call.1} parent=1 // pred_check
      _
    $region11: #{tpu_custom_call.1} parent=1 // pred_check_branch
      %15 = sbr.rel (0) target = $region13
    $region12: #{tpu_custom_call.1} parent=1 // pred_region
      _
    $region13: #{tpu_custom_call.1} parent=1 // pred_fallthru
      _
    // Predicated region
    $region14: #{tpu_custom_call.1} parent=1 // pred_check
      _
    $region15: #{tpu_custom_call.1} parent=1 // pred_check_branch
      %17 = sbr.rel (0) target = $region17
    $region16: #{tpu_custom_call.1} parent=1 // pred_region
      _
    $region17: #{tpu_custom_call.1} parent=1 // pred_fallthru
      _
    %p18 = scmp.eq.s32.totalorder 0, 0
    // Predicated region
    $region18: #{tpu_custom_call.1} parent=1 // pred_check
      %p19 = pneg %p18
    $region19: #{tpu_custom_call.1} parent=1 // pred_check_branch
      %21 = sbr.rel (%p19) target = $region21
    $region20: #{tpu_custom_call.1} parent=1 // pred_region
      %vm22 = vcmask 254976
      %23 = vst.msk [vmem:[#allocation2] sm:$0x3] %vm22, 0.0
      %vm24 = vcmask 1024
      %25 = vst.msk [vmem:[#allocation3] sm:$0x3] %vm24, 0.0
    $region21: #{tpu_custom_call.1} parent=1 // pred_fallthru
      _
    %v26 = vld [vmem:[%s0] sm:$0xff]
    %v27 = vld [vmem:[%s0 + $0x8] sm:$0xff]
    %v28 = vld [vmem:[%s1] sm:$0xff]
    %v29 = vld [vmem:[%s1 + $0x8] sm:$0xff]
    %v30 = vld [vmem:[%s1 + $0x10] sm:$0xff]
    %v31 = vld [vmem:[%s1 + $0x18] sm:$0xff]
    %vm32 = vcmask 261120
    %v34 = vsel %vm32, %v26, 0
    %v37 = vsel %vm32, %v27, 0
    %39 = vmatprep.subr.mxu0 0.0
    %40 = vmatpush1.msra.mxu0 %v28
    %41 = vmatprep.subr.mxu0 0.0
    %42 = vmatpush1.msra.mxu0 %v29
    %43 = vmatprep.subr.mxu0 0.0
    %44 = vmatpush1.msra.mxu0 %v30
    %45 = vmatprep.subr.mxu0 0.0
    %46 = vmatpush1.msra.mxu0 %v31
    %47 = vmatprep.subr.mxu0 0.0
    %48 = vmatpush1.msra.mxu0 0.0
    %49 = vmatprep.subr.mxu0 0.0
    %50 = vmatpush1.msra.mxu0 0.0
    %51 = vmatprep.subr.mxu0 0.0
    %52 = vmatpush1.msra.mxu0 0.0
    %53 = vmatprep.subr.mxu0 0.0
    %54 = vmatpush1.msra.mxu0 0.0
    %55 = vmatprep.subr.mxu0 0.0
    %56 = vmatpush1.msra.mxu0 0.0
    %57 = vmatprep.subr.mxu0 0.0
    %58 = vmatpush1.msra.mxu0 0.0
    %59 = vmatprep.subr.mxu0 0.0
    %60 = vmatpush1.msra.mxu0 0.0
    %61 = vmatprep.subr.mxu0 0.0
    %62 = vmatpush1.msra.mxu0 0.0
    %63 = vmatprep.subr.mxu0 0.0
    %64 = vmatpush1.msra.mxu0 0.0
    %65 = vmatprep.subr.mxu0 0.0
    %66 = vmatpush1.msra.mxu0 0.0
    %67 = vmatprep.subr.mxu0 0.0
    %68 = vmatpush1.msra.mxu0 0.0
    %69 = vmatprep.subr.mxu0 0.0
    %70 = vmatpush1.msra.mxu0 0.0
    %71 = vmatprep.subr.mxu0 0.0
    %72 = vmatpush1.msra.mxu0 0.0
    %73 = vmatprep.subr.mxu0 0.0
    %74 = vmatpush1.msra.mxu0 0.0
    %75 = vmatprep.subr.mxu0 0.0
    %76 = vmatpush1.msra.mxu0 0.0
    %77 = vmatprep.subr.mxu0 0.0
    %78 = vmatpush1.msra.mxu0 0.0
    %79 = vmatprep.subr.mxu0 0.0
    %80 = vmatpush1.msra.mxu0 0.0
    %81 = vmatprep.subr.mxu0 0.0
    %82 = vmatpush1.msra.mxu0 0.0
    %83 = vmatprep.subr.mxu0 0.0
    %84 = vmatpush1.msra.mxu0 0.0
    %85 = vmatprep.subr.mxu0 0.0
    %86 = vmatpush1.msra.mxu0 0.0
    %87 = vmatprep.subr.mxu0 0.0
    %88 = vmatpush1.msra.mxu0 0.0
    %89 = vmatprep.subr.mxu0 0.0
    %90 = vmatpush1.msra.mxu0 0.0
    %91 = vmatprep.subr.mxu0 0.0
    %92 = vmatpush1.msra.mxu0 0.0
    %93 = vmatprep.subr.mxu0 0.0
    %94 = vmatpush1.msra.mxu0 0.0
    %95 = vmatprep.subr.mxu0 0.0
    %96 = vmatpush1.msra.mxu0 0.0
    %97 = vmatprep.subr.mxu0 0.0
    %98 = vmatpush1.msra.mxu0 0.0
    %99 = vmatprep.subr.mxu0 0.0
    %100 = vmatpush1.msra.mxu0 0.0
    %101 = vmatprep.subr.mxu0 0.0
    %102 = vmatpush1.msra.mxu0 0.0
    %103 = vmatprep.mubr.f32.mxu0 0.0
    %104 = vmatmul.mubr.f32.gmra.mrb[0].mxu0 %v34
    %v105 = vpop.f32.mrb[0].mxu0
    %v106 = vadd.f32 0.0, %v105
    %v107 = vpop.f32.mrb[0].mxu0
    %108 = vmatprep.mubr.f32.mxu0 0.0
    %109 = vmatmul.mubr.f32.gmra.mrb[0].mxu0 %v37
    %v110 = vpop.f32.mrb[0].mxu0
    %v111 = vadd.f32 0.0, %v110
    %v112 = vpop.f32.mrb[0].mxu0
    %113 = vdwg.mxu0
    %v114 = vld [vmem:[%s2] sm:$0xff]
    %v115 = vadd.f32 %v106, %v114
    %v116 = vadd.f32 %v111, %v114
    %v117 = vtanh.pop %v115
    %v118 = vtanh.pop %v116
    %v119 = vmul.f32 %v117, 1.442695
    %v120 = vpow.pop %v119
    %v121 = vmul.f32 %v118, 1.442695
    %v122 = vpow.pop %v121
    %v123 = vld [vmem:[%s3] sm:$0x1]
    %v124 = vunpack.c.l.bf16 %v123
    %v125 = vlaneseq
    %v126 = vshrl.u32 %v125, 7
    %v127 = vsub.s32 0, %v126
    %v128 = vrot.slane %v124, %v127
    %130 = vbcast.lane.b32.xlu0 %v128, 256
    %v131 = vpop.permute.xlu0 %130
    %v132 = vlaneseq
    %v133 = vshrl.u32 %v132, 7
    %v134 = vsub.s32 1, %v133
    %v135 = vrot.slane %v124, %v134
    %137 = vbcast.lane.b32.xlu0 %v135, 256
    %v138 = vpop.permute.xlu0 %137
    %v139 = vmul.f32 %v120, %v131
    %v140 = vmul.f32 %v122, %v138
    %v141 = vld [vmem:[#allocation3] sm:$0x3]
    %vm142 = vcmask 7168
    %v143 = vsel %vm142, %v139, 0.0
    %v144 = vrot.slane %v143, 4
    %v145 = vadd.f32 %v143, %v144
    %v146 = vrot.slane %v145, 2
    %v147 = vadd.f32 %v145, %v146
    %v148 = vrot.slane %v147, 1
    %v149 = vadd.f32 %v147, %v148
    %v150 = vsel %vm142, %v140, 0.0
    %v151 = vrot.slane %v150, 4
    %v152 = vadd.f32 %v150, %v151
    %v153 = vrot.slane %v152, 2
    %v154 = vadd.f32 %v152, %v153
    %v155 = vrot.slane %v154, 1
    %v156 = vadd.f32 %v154, %v155
    %vm159 = vcmask 1041409
    %v160 = vsel %vm159, %v156, %v149
    %v162 = vadd.f32 %v141, %v160
    %vm163 = vcmask 1024
    %164 = vst.msk [vmem:[#allocation3] sm:$0x3] %vm163, %v162
    %v165 = vld [vmem:[#allocation2] sm:$0x3]
    %167 = vset.pattern.permute.xlu0 0
    %168 = vperm.xlu0 %167, %v139
    %v169 = vpop.permute.xlu0 %168
    %172 = vset.pattern.permute.xlu0 0
    %173 = vperm.xlu0 %172, %v140
    %v174 = vpop.permute.xlu0 %173
    %v176 = vmul.f32 %v169, %v26
    %v177 = vmul.f32 %v174, %v27
    %v178 = vsel %vm32, %v176, 0.0
    %v179 = vrot.slane %v178, 4
    %v180 = vadd.f32 %v178, %v179
    %v181 = vrot.slane %v180, 2
    %v182 = vadd.f32 %v180, %v181
    %v183 = vrot.slane %v182, 1
    %v184 = vadd.f32 %v182, %v183
    %v185 = vsel %vm32, %v177, 0.0
    %v186 = vrot.slane %v185, 4
    %v187 = vadd.f32 %v185, %v186
    %v188 = vrot.slane %v187, 2
    %v189 = vadd.f32 %v187, %v188
    %v190 = vrot.slane %v189, 1
    %v191 = vadd.f32 %v189, %v190
    %v194 = vsel %vm159, %v191, %v184
    %v196 = vadd.f32 %v165, %v194
    %vm197 = vcmask 254976
    %198 = vst.msk [vmem:[#allocation2] sm:$0x3] %vm197, %v196
    // Predicated region
    $region22: #{tpu_custom_call.1} parent=1 // pred_check
      %p199 = pneg %p18
    $region23: #{tpu_custom_call.1} parent=1 // pred_check_branch
      %201 = sbr.rel (%p199) target = $region25
    $region24: #{tpu_custom_call.1} parent=1 // pred_region
      %v202 = vld [vmem:[#allocation3] sm:$0x3]
      %v203 = vadd.f32 %v202, 1e-08
      %v204 = vrcp.pop %v203
      %v205 = vmul.f32 1.0, %v204
      %v206 = vld [vmem:[#allocation2] sm:$0x3]
      %208 = vset.pattern.permute.xlu0 0
      %209 = vperm.xlu0 %208, %v205
      %v210 = vpop.permute.xlu0 %209
      %v212 = vmul.f32 %v206, %v210
      %213 = vst.msk [vmem:[#allocation4] sm:$0x3] %vm197, %v212
    $region25: #{tpu_custom_call.1} parent=1 // pred_fallthru
      _
    // Predicated region
    $region26: #{tpu_custom_call.1} parent=1 // pred_check
      _
    $region27: #{tpu_custom_call.1} parent=1 // pred_check_branch
      %215 = sbr.rel (0) target = $region29
    $region28: #{tpu_custom_call.1} parent=1 // pred_region
      %s217 = ssub.s32 32, 32
      %218 = vsyncadd [#allocation5], %s217
      %s220 = sshll.u32 [#allocation4], 4
      %s221 = int_to_ptr.vmem [resolvable:$true] %s220
      %223 = dma.vmem_to_hbm [thread:$0]  %s221, 32, %s4, [#allocation5]
    $region29: #{tpu_custom_call.1} parent=1 // pred_fallthru
      _
    // Predicated region
    $region30: #{tpu_custom_call.1} parent=1 // pred_check
      _
    $region31: #{tpu_custom_call.1} parent=1 // pred_check_branch
      %225 = sbr.rel (0) target = $region33
    $region32: #{tpu_custom_call.1} parent=1 // pred_region
      %226 = dma.done [#allocation5], 32
    $region33: #{tpu_custom_call.1} parent=1 // pred_fallthru
      _
    %227 = vsyncpa [#allocation5], 1

</llo_original>
